<compile_context>
chip_gen: v6e
topology: v6e:2x2x1
jax: 0.10.0
libtpu: 0.0.40
codegen_flags: <defaults>
</compile_context>

<pallas_src>
import functools

import jax
import jax.numpy as jnp
from jax import lax
from jax.experimental import pallas as pl
from jax.experimental.pallas import tpu as pltpu


def _round_up(v, m):
  return (v + m - 1) // m * m


def _vmem_capacity_bytes(default=64 << 20):
  """Physical per-core VMEM, with a conservative fallback."""
  try:
    info = pltpu.get_tpu_info()
  except Exception:
    return default
  for name in ("vmem_capacity_bytes", "vmem_size_bytes", "vmem_bytes"):
    v = getattr(info, name, None)
    if isinstance(v, int) and v > 0:
      return v
  return default


def _default_bf16_tanh():
  """bf16 tanh on v6e/v7x (bf16 EUP); f32 tanh on v5e and older."""
  try:
    kind = jax.devices()[0].device_kind.lower()
  except Exception:
    return True
  return not any(tag in kind for tag in ("v2", "v3", "v4", "v5"))


def _const_block_spec(shape):
  """Grid-invariant (weight/bias) block: request single buffering."""
  index_map = lambda i: (0,) * len(shape)
  try:
    return pl.BlockSpec(shape, index_map, pipeline_mode=pl.Buffered(1))
  except (AttributeError, TypeError):
    # Older Pallas without per-operand pipeline_mode: fall back to default.
    return pl.BlockSpec(shape, index_map)


def _mlp_res_kernel(x_ref,
                    w1, b1, w2, b2, w3, b3,   # encoder params
                    w4, b4, w5, b5, w6, b6,   # decoder params
                    out_ref, *, bf16_tanh):
  """Whole residual-autoencoder MLP for one batch tile.

  x_ref:   (bc, dim) in the caller's dtype (batch rows on sublanes).
  out_ref: (dim, bc) f32 (batch on lanes -> unmasked, lane-dense stores).
  """
  xb = x_ref[...].astype(jnp.bfloat16)            # (bc, dim) matmul operand

  def act(v):                                     # v: f32 (width, bc)
    if bf16_tanh:
      return jnp.tanh(v.astype(jnp.bfloat16))     # bf16 EUP path (v6e / v7x)
    return jnp.tanh(v).astype(jnp.bfloat16)       # f32 EUP path (v5e)

  def lin(h_bf16, w_ref, b_ref):
    # (out, in) @ (in, bc) -> (out, bc); bf16 operands, f32 MXU accumulation.
    return jnp.dot(w_ref[...], h_bf16,
                   preferred_element_type=jnp.float32) + b_ref[...]

  # Layer 1 contracts the feature (last) axis of the (bc, dim) block directly,
  # so no transpose of the big batch dim is needed on the input path.
  h = lax.dot_general(w1[...], xb, (((1,), (1,)), ((), ())),
                      preferred_element_type=jnp.float32) + b1[...]
  h = act(h)                                      # (d+t,  bc)
  h = act(lin(h, w2, b2))                         # (d+2t, bc)
  h = lin(h, w3, b3).astype(jnp.bfloat16)         # z bottleneck, no tanh
  h = act(lin(h, w4, b4))                         # (d+2t, bc)
  h = act(lin(h, w5, b5))                         # (d+t,  bc)
  y = lin(h, w6, b6)                              # (dim,  bc) f32

  # Residual: re-read the x tile (already resident in VMEM) only here so its
  # f32 copy is not live across the whole body; one small XLU transpose puts
  # it into the lane-dense output orientation.
  x_res = jnp.transpose(x_ref[...].astype(jnp.float32))    # (dim, bc)
  out_ref[...] = (y + x_res).astype(out_ref.dtype)


def stocked_res_autoencoder(x, params, *, dim, block_cols=2048,
                            min_grid_steps=8, bf16_tanh=None):
  """Forward pass. `x` reshapes to (-1, dim) like the PyTorch .view(-1, dim).

  params: list of 6 (W, b) with W[out, in] (PyTorch nn.Linear layout), b[out].
  """
  if bf16_tanh is None:
    bf16_tanh = _default_bf16_tanh()

  x2d = x.reshape(-1, dim)
  n_rows = x2d.shape[0]
  in_dtype = x2d.dtype
  x_itemsize = jnp.dtype(in_dtype).itemsize

  out_widths = [int(w.shape[0]) for (w, _) in params]
  # bf16 weights + f32 (out, 1) biases, single-buffered in VMEM.
  param_bytes = sum(int(w.size) * 2 + int(b.size) * 4 for (w, b) in params)

  # ---- generation-aware VMEM budget (~48 MiB on v7x, ~96 MiB on v5e/v6e) ----
  vmem_cap = int(_vmem_capacity_bytes() * 3 // 4)

  # ---- batch tile: big enough to amortize the ~0.35us per-grid-step cost,
  #      small enough to keep >= min_grid_steps steps (v7x 2-TC sharding) and
  #      to fit the VMEM budget.  Always a multiple of 128 (lane-dense). ----
  per_col_bytes = (dim + sum(out_widths)) * 6 + 2 * dim * (x_itemsize + 4)
  budget_cols = (vmem_cap - param_bytes - (8 << 20)) // max(per_col_bytes, 1)
  bc = min(
      _round_up(block_cols, 128),
      _round_up(max(pl.cdiv(n_rows, min_grid_steps), 128), 128),
      max((budget_cols // 128) * 128, 128),
  )
  bc = max(int(bc), 128)

  n_pad = _round_up(max(n_rows, 1), bc)
  if n_pad != n_rows:
    # Only pays an extra pass when the batch is not already tile-aligned.
    x2d = jnp.pad(x2d, ((0, n_pad - n_rows), (0, 0)))
  grid = (n_pad // bc,)

  # ---- flatten params: bf16 weights (MXU fast path), f32 (out, 1) biases ----
  flat_params = []
  weight_specs = []
  for (w, b) in params:
    w_bf = w.astype(jnp.bfloat16)                     # (out, in)
    b_2d = b.reshape(-1, 1).astype(jnp.float32)       # (out, 1)
    flat_params += [w_bf, b_2d]
    weight_specs += [_const_block_spec(w_bf.shape), _const_block_spec(b_2d.shape)]
  # TODO(synk): if dim/theta grow so the weight stack stops fitting the
  # per-generation budget (~48 MiB v7x / ~96 MiB v5e,v6e), tile the wide middle
  # layers over their output dim with an extra "arbitrary" grid axis.

  # ---- VMEM limit and cost estimate (all static Python ints) ----
  act_bytes = bc * (dim + sum(out_widths)) * 6              # f32 + bf16 live copies
  io_bytes = 2 * bc * dim * x_itemsize + 2 * dim * bc * 4   # double-buffered x / out
  vmem_limit = param_bytes + act_bytes + io_bytes + (8 << 20)
  vmem_limit = int(min(max(vmem_limit, 32 << 20), vmem_cap))

  flops = 2 * n_pad * sum(int(w.shape[0]) * int(w.shape[1]) for (w, _) in params)
  transcendentals = n_pad * sum(out_widths[i] for i in (0, 1, 3, 4))
  bytes_accessed = dim * n_pad * (x_itemsize + 4) + param_bytes

  kernel = functools.partial(_mlp_res_kernel, bf16_tanh=bool(bf16_tanh))

  outT = pl.pallas_call(
      kernel,
      out_shape=jax.ShapeDtypeStruct((dim, n_pad), jnp.float32),
      grid_spec=pltpu.PrefetchScalarGridSpec(
          num_scalar_prefetch=0,
          grid=grid,
          in_specs=[pl.BlockSpec((bc, dim), lambda i: (i, 0))] + weight_specs,
          out_specs=pl.BlockSpec((dim, bc), lambda i: (0, i)),
      ),
      compiler_params=pltpu.CompilerParams(
          dimension_semantics=("parallel",),
          vmem_limit_bytes=vmem_limit,
      ),
      cost_estimate=pl.CostEstimate(
          flops=flops,
          transcendentals=transcendentals,
          bytes_accessed=bytes_accessed,
      ),
  )(x2d, *flat_params)

  out2d = jnp.transpose(outT)[:n_rows].astype(in_dtype)
  return out2d.reshape(-1, dim)


def init_params(key, dim, theta, dtype=jnp.float32):
  """PyTorch nn.Linear-style init. Layer l: W[out, in], b[out]."""
  sizes = [dim + theta * k for k in (0, 1, 2, 3, 2, 1, 0)]
  params = []
  for i in range(6):
    fan_in, fan_out = sizes[i], sizes[i + 1]
    key, kw, kb = jax.random.split(key, 3)
    bound = 1.0 / float(fan_in) ** 0.5
    w = jax.random.uniform(kw, (fan_out, fan_in), dtype, -bound, bound)
    b = jax.random.uniform(kb, (fan_out,), dtype, -bound, bound)
    params.append((w, b))
  return params


def reference_forward(x, params, dim, *, bf16_tanh):
  """Pure-JAX reference mirroring the kernel's precision policy:
  bf16 matmul operands, f32 accumulation, f32 bias/residual, tanh in the
  same precision the kernel uses on this chip generation."""
  x2d = x.reshape(-1, dim).astype(jnp.float32)
  h = x2d
  for idx, (w, b) in enumerate(params):
    hb = h.astype(jnp.bfloat16)
    wb = w.astype(jnp.bfloat16)
    h = jnp.dot(hb, wb.T, preferred_element_type=jnp.float32) + b.astype(jnp.float32)
    if idx in (0, 1, 3, 4):
      if bf16_tanh:
        h = jnp.tanh(h.astype(jnp.bfloat16)).astype(jnp.float32)
      else:
        h = jnp.tanh(h)
  return (h + x2d).reshape(-1, dim)


if __name__ == "__main__":
  dim, theta = 16, 16
  key = jax.random.PRNGKey(0)
  kx, kp = jax.random.split(key)

  # x of shape (2, 4, 16, 16): the forward's view(-1, dim) flattens it to (128, 16).
  x = jax.random.normal(kx, (2, 4, 16, dim), dtype=jnp.float32)
  params = init_params(kp, dim, theta)

  use_bf16_tanh = _default_bf16_tanh()
  fwd = jax.jit(functools.partial(stocked_res_autoencoder, dim=dim,
                                  bf16_tanh=use_bf16_tanh))
  out = jax.block_until_ready(fwd(x, params))

  ref = reference_forward(x, params, dim, bf16_tanh=use_bf16_tanh)
  assert out.shape == (2 * 4 * 16, dim)
  assert jnp.allclose(out, ref, atol=2e-2, rtol=2e-2), "mismatch vs reference"

  print("KERNEL_OK")
</pallas_src>

<mosaic_0001>
module attributes {stable_mosaic.version = 11 : i64} {
  func.func @_mlp_res_kernel(%arg0: i32, %arg1: memref<128x16xf32, #tpu.memory_space<vmem>>, %arg2: memref<32x16xbf16, #tpu.memory_space<vmem>>, %arg3: memref<32x1xf32, #tpu.memory_space<vmem>>, %arg4: memref<48x32xbf16, #tpu.memory_space<vmem>>, %arg5: memref<48x1xf32, #tpu.memory_space<vmem>>, %arg6: memref<64x48xbf16, #tpu.memory_space<vmem>>, %arg7: memref<64x1xf32, #tpu.memory_space<vmem>>, %arg8: memref<48x64xbf16, #tpu.memory_space<vmem>>, %arg9: memref<48x1xf32, #tpu.memory_space<vmem>>, %arg10: memref<32x48xbf16, #tpu.memory_space<vmem>>, %arg11: memref<32x1xf32, #tpu.memory_space<vmem>>, %arg12: memref<16x32xbf16, #tpu.memory_space<vmem>>, %arg13: memref<16x1xf32, #tpu.memory_space<vmem>>, %arg14: memref<16x128xf32, #tpu.memory_space<vmem>>) attributes {dimension_semantics = [#tpu.dimension_semantics<parallel>], iteration_bounds = array<i64: 1>, scalar_prefetch = 0 : i64, scratch_operands = 0 : i64, tpu.core_type = #tpu.core_type<tc>, window_params = [{transform_indices = @transform_0, window_bounds = array<i64: 128, 16>}, {pipeline_mode = #tpu.pipeline_mode<synchronous>, transform_indices = @transform_1, window_bounds = array<i64: 32, 16>}, {pipeline_mode = #tpu.pipeline_mode<synchronous>, transform_indices = @transform_2, window_bounds = array<i64: 32, 1>}, {pipeline_mode = #tpu.pipeline_mode<synchronous>, transform_indices = @transform_3, window_bounds = array<i64: 48, 32>}, {pipeline_mode = #tpu.pipeline_mode<synchronous>, transform_indices = @transform_4, window_bounds = array<i64: 48, 1>}, {pipeline_mode = #tpu.pipeline_mode<synchronous>, transform_indices = @transform_5, window_bounds = array<i64: 64, 48>}, {pipeline_mode = #tpu.pipeline_mode<synchronous>, transform_indices = @transform_6, window_bounds = array<i64: 64, 1>}, {pipeline_mode = #tpu.pipeline_mode<synchronous>, transform_indices = @transform_7, window_bounds = array<i64: 48, 64>}, {pipeline_mode = #tpu.pipeline_mode<synchronous>, transform_indices = @transform_8, window_bounds = array<i64: 48, 1>}, {pipeline_mode = #tpu.pipeline_mode<synchronous>, transform_indices = @transform_9, window_bounds = array<i64: 32, 48>}, {pipeline_mode = #tpu.pipeline_mode<synchronous>, transform_indices = @transform_10, window_bounds = array<i64: 32, 1>}, {pipeline_mode = #tpu.pipeline_mode<synchronous>, transform_indices = @transform_11, window_bounds = array<i64: 16, 32>}, {pipeline_mode = #tpu.pipeline_mode<synchronous>, transform_indices = @transform_12, window_bounds = array<i64: 16, 1>}, {transform_indices = @transform_13, window_bounds = array<i64: 16, 128>}]} {
    %c0 = arith.constant 0 : index
    %c0_0 = arith.constant 0 : index
    %0 = vector.load %arg1[%c0, %c0_0] : memref<128x16xf32, #tpu.memory_space<vmem>>, vector<128x16xf32>
    %1 = arith.truncf %0 : vector<128x16xf32> to vector<128x16xbf16>
    %c0_1 = arith.constant 0 : index
    %c0_2 = arith.constant 0 : index
    %2 = vector.load %arg2[%c0_1, %c0_2] : memref<32x16xbf16, #tpu.memory_space<vmem>>, vector<32x16xbf16>
    %cst = arith.constant dense<0.000000e+00> : vector<32x128xf32>
    %3 = tpu.matmul %2, %1, %cst {dimension_numbers = #tpu.dot_dimension_numbers<[1], [1], [0], [0], [0, 0, 1, 0], [], []>} : vector<32x16xbf16>, vector<128x16xbf16>, vector<32x128xf32> -> vector<32x128xf32>
    %c0_3 = arith.constant 0 : index
    %c0_4 = arith.constant 0 : index
    %4 = vector.load %arg3[%c0_3, %c0_4] : memref<32x1xf32, #tpu.memory_space<vmem>>, vector<32x1xf32>
    %5 = vector.broadcast %4 : vector<32x1xf32> to vector<32x128xf32>
    %6 = arith.addf %3, %5 : vector<32x128xf32>
    %7 = arith.truncf %6 : vector<32x128xf32> to vector<32x128xbf16>
    %8 = math.tanh %7 : vector<32x128xbf16>
    %c0_5 = arith.constant 0 : index
    %c0_6 = arith.constant 0 : index
    %9 = vector.load %arg4[%c0_5, %c0_6] : memref<48x32xbf16, #tpu.memory_space<vmem>>, vector<48x32xbf16>
    %cst_7 = arith.constant dense<0.000000e+00> : vector<48x128xf32>
    %10 = tpu.matmul %9, %8, %cst_7 {dimension_numbers = #tpu.dot_dimension_numbers<[1], [0], [0], [1], [0, 0, 1, 1], [], []>} : vector<48x32xbf16>, vector<32x128xbf16>, vector<48x128xf32> -> vector<48x128xf32>
    %c0_8 = arith.constant 0 : index
    %c0_9 = arith.constant 0 : index
    %11 = vector.load %arg5[%c0_8, %c0_9] : memref<48x1xf32, #tpu.memory_space<vmem>>, vector<48x1xf32>
    %12 = vector.broadcast %11 : vector<48x1xf32> to vector<48x128xf32>
    %13 = arith.addf %10, %12 : vector<48x128xf32>
    %14 = arith.truncf %13 : vector<48x128xf32> to vector<48x128xbf16>
    %15 = math.tanh %14 : vector<48x128xbf16>
    %c0_10 = arith.constant 0 : index
    %c0_11 = arith.constant 0 : index
    %16 = vector.load %arg6[%c0_10, %c0_11] : memref<64x48xbf16, #tpu.memory_space<vmem>>, vector<64x48xbf16>
    %cst_12 = arith.constant dense<0.000000e+00> : vector<64x128xf32>
    %17 = tpu.matmul %16, %15, %cst_12 {dimension_numbers = #tpu.dot_dimension_numbers<[1], [0], [0], [1], [0, 0, 1, 1], [], []>} : vector<64x48xbf16>, vector<48x128xbf16>, vector<64x128xf32> -> vector<64x128xf32>
    %c0_13 = arith.constant 0 : index
    %c0_14 = arith.constant 0 : index
    %18 = vector.load %arg7[%c0_13, %c0_14] : memref<64x1xf32, #tpu.memory_space<vmem>>, vector<64x1xf32>
    %19 = vector.broadcast %18 : vector<64x1xf32> to vector<64x128xf32>
    %20 = arith.addf %17, %19 : vector<64x128xf32>
    %21 = arith.truncf %20 : vector<64x128xf32> to vector<64x128xbf16>
    %c0_15 = arith.constant 0 : index
    %c0_16 = arith.constant 0 : index
    %22 = vector.load %arg8[%c0_15, %c0_16] : memref<48x64xbf16, #tpu.memory_space<vmem>>, vector<48x64xbf16>
    %cst_17 = arith.constant dense<0.000000e+00> : vector<48x128xf32>
    %23 = tpu.matmul %22, %21, %cst_17 {dimension_numbers = #tpu.dot_dimension_numbers<[1], [0], [0], [1], [0, 0, 1, 1], [], []>} : vector<48x64xbf16>, vector<64x128xbf16>, vector<48x128xf32> -> vector<48x128xf32>
    %c0_18 = arith.constant 0 : index
    %c0_19 = arith.constant 0 : index
    %24 = vector.load %arg9[%c0_18, %c0_19] : memref<48x1xf32, #tpu.memory_space<vmem>>, vector<48x1xf32>
    %25 = vector.broadcast %24 : vector<48x1xf32> to vector<48x128xf32>
    %26 = arith.addf %23, %25 : vector<48x128xf32>
    %27 = arith.truncf %26 : vector<48x128xf32> to vector<48x128xbf16>
    %28 = math.tanh %27 : vector<48x128xbf16>
    %c0_20 = arith.constant 0 : index
    %c0_21 = arith.constant 0 : index
    %29 = vector.load %arg10[%c0_20, %c0_21] : memref<32x48xbf16, #tpu.memory_space<vmem>>, vector<32x48xbf16>
    %cst_22 = arith.constant dense<0.000000e+00> : vector<32x128xf32>
    %30 = tpu.matmul %29, %28, %cst_22 {dimension_numbers = #tpu.dot_dimension_numbers<[1], [0], [0], [1], [0, 0, 1, 1], [], []>} : vector<32x48xbf16>, vector<48x128xbf16>, vector<32x128xf32> -> vector<32x128xf32>
    %c0_23 = arith.constant 0 : index
    %c0_24 = arith.constant 0 : index
    %31 = vector.load %arg11[%c0_23, %c0_24] : memref<32x1xf32, #tpu.memory_space<vmem>>, vector<32x1xf32>
    %32 = vector.broadcast %31 : vector<32x1xf32> to vector<32x128xf32>
    %33 = arith.addf %30, %32 : vector<32x128xf32>
    %34 = arith.truncf %33 : vector<32x128xf32> to vector<32x128xbf16>
    %35 = math.tanh %34 : vector<32x128xbf16>
    %c0_25 = arith.constant 0 : index
    %c0_26 = arith.constant 0 : index
    %36 = vector.load %arg12[%c0_25, %c0_26] : memref<16x32xbf16, #tpu.memory_space<vmem>>, vector<16x32xbf16>
    %cst_27 = arith.constant dense<0.000000e+00> : vector<16x128xf32>
    %37 = tpu.matmul %36, %35, %cst_27 {dimension_numbers = #tpu.dot_dimension_numbers<[1], [0], [0], [1], [0, 0, 1, 1], [], []>} : vector<16x32xbf16>, vector<32x128xbf16>, vector<16x128xf32> -> vector<16x128xf32>
    %c0_28 = arith.constant 0 : index
    %c0_29 = arith.constant 0 : index
    %38 = vector.load %arg13[%c0_28, %c0_29] : memref<16x1xf32, #tpu.memory_space<vmem>>, vector<16x1xf32>
    %39 = vector.broadcast %38 : vector<16x1xf32> to vector<16x128xf32>
    %40 = arith.addf %37, %39 : vector<16x128xf32>
    %c0_30 = arith.constant 0 : index
    %c0_31 = arith.constant 0 : index
    %41 = vector.load %arg1[%c0_30, %c0_31] : memref<128x16xf32, #tpu.memory_space<vmem>>, vector<128x16xf32>
    %42 = tpu.transpose %41, [1, 0] : vector<128x16xf32> -> vector<16x128xf32>
    %43 = arith.addf %40, %42 : vector<16x128xf32>
    %c0_32 = arith.constant 0 : index
    %c0_33 = arith.constant 0 : index
    %44 = vector.load %arg14[%c0_32, %c0_33] : memref<16x128xf32, #tpu.memory_space<vmem>>, vector<16x128xf32>
    tpu.vector_store %arg14[%c0_32, %c0_33], %43 {strides = array<i32>} : memref<16x128xf32, #tpu.memory_space<vmem>>, vector<16x128xf32>,
    return
  }
  func.func @transform_0(%arg0: i32) -> (i32, i32) {
    %c0_i32 = arith.constant 0 : i32
    %c0_i32_0 = arith.constant 0 : i32
    return %arg0, %c0_i32 : i32, i32
  }
  func.func @transform_1(%arg0: i32) -> (i32, i32) {
    %c0_i32 = arith.constant 0 : i32
    %c0_i32_0 = arith.constant 0 : i32
    %c0_i32_1 = arith.constant 0 : i32
    return %c0_i32, %c0_i32_0 : i32, i32
  }
  func.func @transform_2(%arg0: i32) -> (i32, i32) {
    %c0_i32 = arith.constant 0 : i32
    %c0_i32_0 = arith.constant 0 : i32
    %c0_i32_1 = arith.constant 0 : i32
    return %c0_i32, %c0_i32_0 : i32, i32
  }
  func.func @transform_3(%arg0: i32) -> (i32, i32) {
    %c0_i32 = arith.constant 0 : i32
    %c0_i32_0 = arith.constant 0 : i32
    %c0_i32_1 = arith.constant 0 : i32
    return %c0_i32, %c0_i32_0 : i32, i32
  }
  func.func @transform_4(%arg0: i32) -> (i32, i32) {
    %c0_i32 = arith.constant 0 : i32
    %c0_i32_0 = arith.constant 0 : i32
    %c0_i32_1 = arith.constant 0 : i32
    return %c0_i32, %c0_i32_0 : i32, i32
  }
  func.func @transform_5(%arg0: i32) -> (i32, i32) {
    %c0_i32 = arith.constant 0 : i32
    %c0_i32_0 = arith.constant 0 : i32
    %c0_i32_1 = arith.constant 0 : i32
    return %c0_i32, %c0_i32_0 : i32, i32
  }
  func.func @transform_6(%arg0: i32) -> (i32, i32) {
    %c0_i32 = arith.constant 0 : i32
    %c0_i32_0 = arith.constant 0 : i32
    %c0_i32_1 = arith.constant 0 : i32
    return %c0_i32, %c0_i32_0 : i32, i32
  }
  func.func @transform_7(%arg0: i32) -> (i32, i32) {
    %c0_i32 = arith.constant 0 : i32
    %c0_i32_0 = arith.constant 0 : i32
    %c0_i32_1 = arith.constant 0 : i32
    return %c0_i32, %c0_i32_0 : i32, i32
  }
  func.func @transform_8(%arg0: i32) -> (i32, i32) {
    %c0_i32 = arith.constant 0 : i32
    %c0_i32_0 = arith.constant 0 : i32
    %c0_i32_1 = arith.constant 0 : i32
    return %c0_i32, %c0_i32_0 : i32, i32
  }
  func.func @transform_9(%arg0: i32) -> (i32, i32) {
    %c0_i32 = arith.constant 0 : i32
    %c0_i32_0 = arith.constant 0 : i32
    %c0_i32_1 = arith.constant 0 : i32
    return %c0_i32, %c0_i32_0 : i32, i32
  }
  func.func @transform_10(%arg0: i32) -> (i32, i32) {
    %c0_i32 = arith.constant 0 : i32
    %c0_i32_0 = arith.constant 0 : i32
    %c0_i32_1 = arith.constant 0 : i32
    return %c0_i32, %c0_i32_0 : i32, i32
  }
  func.func @transform_11(%arg0: i32) -> (i32, i32) {
    %c0_i32 = arith.constant 0 : i32
    %c0_i32_0 = arith.constant 0 : i32
    %c0_i32_1 = arith.constant 0 : i32
    return %c0_i32, %c0_i32_0 : i32, i32
  }
  func.func @transform_12(%arg0: i32) -> (i32, i32) {
    %c0_i32 = arith.constant 0 : i32
    %c0_i32_0 = arith.constant 0 : i32
    %c0_i32_1 = arith.constant 0 : i32
    return %c0_i32, %c0_i32_0 : i32, i32
  }
  func.func @transform_13(%arg0: i32) -> (i32, i32) {
    %c0_i32 = arith.constant 0 : i32
    %c0_i32_0 = arith.constant 0 : i32
    return %c0_i32, %arg0 : i32, i32
  }
}

</mosaic_0001>

<llo_original>
// kernel: stocked_res_autoencoder.1
$region0: #{stocked_res_autoencoder.1}
  #allocation0 [shape = 'u32[]', space=smem, size = 0x4, offset = 0x4, fixed_abs, tag = 'smem constant byte address 0x4 - core index']
  #allocation1 [shape = 'u32[144,128]{1,0:T(1,128)}', space=vmem, size = 0x12000, scoped, tag = 'internal scratch']
  %s0 = inlined_call_operand.vmem [shape: f32[128,16], index: 0, kind: input, shape index: {}]
  %s1 = inlined_call_operand.vmem [shape: bf16[32,16], index: 1, kind: input, shape index: {}]
  %s2 = inlined_call_operand.vmem [shape: f32[32,1], index: 2, kind: input, shape index: {}]
  %s3 = inlined_call_operand.vmem [shape: bf16[48,32], index: 3, kind: input, shape index: {}]
  %s4 = inlined_call_operand.vmem [shape: f32[48,1], index: 4, kind: input, shape index: {}]
  %s5 = inlined_call_operand.vmem [shape: bf16[64,48], index: 5, kind: input, shape index: {}]
  %s6 = inlined_call_operand.vmem [shape: f32[64,1], index: 6, kind: input, shape index: {}]
  %s7 = inlined_call_operand.vmem [shape: bf16[48,64], index: 7, kind: input, shape index: {}]
  %s8 = inlined_call_operand.vmem [shape: f32[48,1], index: 8, kind: input, shape index: {}]
  %s9 = inlined_call_operand.vmem [shape: bf16[32,48], index: 9, kind: input, shape index: {}]
  %s10 = inlined_call_operand.vmem [shape: f32[32,1], index: 10, kind: input, shape index: {}]
  %s11 = inlined_call_operand.vmem [shape: bf16[16,32], index: 11, kind: input, shape index: {}]
  %s12 = inlined_call_operand.vmem [shape: f32[16,1], index: 12, kind: input, shape index: {}]
  %s13 = inlined_call_operand.hbm [shape: f32[16,128], index: 13, kind: output, shape index: {}]
  %s14 = sld [smem:[#allocation0]]
  $region62: #{stocked_res_autoencoder.1} parent=0
    _
  %s16 = ssub.s32 1, %s14
  %s17 = scalar_select 0, %s16, %s14
  $region1: #{stocked_res_autoencoder.1} parent=0
    #allocation2 [shape = 'u8[8192]{0}', space=vmem, size = 0x2000, scoped, tag = 'output window, operand 0, single buffered']
    #allocation3 [shape = 's32[1]{0}', space=sflag, size = 0x4, scoped, tag = 'scoped memory for stocked_res_autoencoder.1']
    %18 = vsyncpa [#allocation3], 0
    // Predicated region
    $region2: #{stocked_res_autoencoder.1} parent=1 // pred_check
      _
    $region3: #{stocked_res_autoencoder.1} parent=1 // pred_check_branch
      %20 = sbr.rel (0) target = $region5
    $region4: #{stocked_res_autoencoder.1} parent=1 // pred_region
      _
    $region5: #{stocked_res_autoencoder.1} parent=1 // pred_fallthru
      _
    // Predicated region
    $region6: #{stocked_res_autoencoder.1} parent=1 // pred_check
      _
    $region7: #{stocked_res_autoencoder.1} parent=1 // pred_check_branch
      %22 = sbr.rel (0) target = $region9
    $region8: #{stocked_res_autoencoder.1} parent=1 // pred_region
      _
    $region9: #{stocked_res_autoencoder.1} parent=1 // pred_fallthru
      _
    // Predicated region
    $region10: #{stocked_res_autoencoder.1} parent=1 // pred_check
      _
    $region11: #{stocked_res_autoencoder.1} parent=1 // pred_check_branch
      %24 = sbr.rel (0) target = $region13
    $region12: #{stocked_res_autoencoder.1} parent=1 // pred_region
      _
    $region13: #{stocked_res_autoencoder.1} parent=1 // pred_fallthru
      _
    // Predicated region
    $region14: #{stocked_res_autoencoder.1} parent=1 // pred_check
      _
    $region15: #{stocked_res_autoencoder.1} parent=1 // pred_check_branch
      %26 = sbr.rel (0) target = $region17
    $region16: #{stocked_res_autoencoder.1} parent=1 // pred_region
      _
    $region17: #{stocked_res_autoencoder.1} parent=1 // pred_fallthru
      _
    // Predicated region
    $region18: #{stocked_res_autoencoder.1} parent=1 // pred_check
      _
    $region19: #{stocked_res_autoencoder.1} parent=1 // pred_check_branch
      %28 = sbr.rel (0) target = $region21
    $region20: #{stocked_res_autoencoder.1} parent=1 // pred_region
      _
    $region21: #{stocked_res_autoencoder.1} parent=1 // pred_fallthru
      _
    // Predicated region
    $region22: #{stocked_res_autoencoder.1} parent=1 // pred_check
      _
    $region23: #{stocked_res_autoencoder.1} parent=1 // pred_check_branch
      %30 = sbr.rel (0) target = $region25
    $region24: #{stocked_res_autoencoder.1} parent=1 // pred_region
      _
    $region25: #{stocked_res_autoencoder.1} parent=1 // pred_fallthru
      _
    // Predicated region
    $region26: #{stocked_res_autoencoder.1} parent=1 // pred_check
      _
    $region27: #{stocked_res_autoencoder.1} parent=1 // pred_check_branch
      %32 = sbr.rel (0) target = $region29
    $region28: #{stocked_res_autoencoder.1} parent=1 // pred_region
      _
    $region29: #{stocked_res_autoencoder.1} parent=1 // pred_fallthru
      _
    // Predicated region
    $region30: #{stocked_res_autoencoder.1} parent=1 // pred_check
      _
    $region31: #{stocked_res_autoencoder.1} parent=1 // pred_check_branch
      %34 = sbr.rel (0) target = $region33
    $region32: #{stocked_res_autoencoder.1} parent=1 // pred_region
      _
    $region33: #{stocked_res_autoencoder.1} parent=1 // pred_fallthru
      _
    // Predicated region
    $region34: #{stocked_res_autoencoder.1} parent=1 // pred_check
      _
    $region35: #{stocked_res_autoencoder.1} parent=1 // pred_check_branch
      %36 = sbr.rel (0) target = $region37
    $region36: #{stocked_res_autoencoder.1} parent=1 // pred_region
      _
    $region37: #{stocked_res_autoencoder.1} parent=1 // pred_fallthru
      _
    // Predicated region
    $region38: #{stocked_res_autoencoder.1} parent=1 // pred_check
      _
    $region39: #{stocked_res_autoencoder.1} parent=1 // pred_check_branch
      %38 = sbr.rel (0) target = $region41
    $region40: #{stocked_res_autoencoder.1} parent=1 // pred_region
      _
    $region41: #{stocked_res_autoencoder.1} parent=1 // pred_fallthru
      _
    // Predicated region
    $region42: #{stocked_res_autoencoder.1} parent=1 // pred_check
      _
    $region43: #{stocked_res_autoencoder.1} parent=1 // pred_check_branch
      %40 = sbr.rel (0) target = $region45
    $region44: #{stocked_res_autoencoder.1} parent=1 // pred_region
      _
    $region45: #{stocked_res_autoencoder.1} parent=1 // pred_fallthru
      _
    // Predicated region
    $region46: #{stocked_res_autoencoder.1} parent=1 // pred_check
      _
    $region47: #{stocked_res_autoencoder.1} parent=1 // pred_check_branch
      %42 = sbr.rel (0) target = $region49
    $region48: #{stocked_res_autoencoder.1} parent=1 // pred_region
      _
    $region49: #{stocked_res_autoencoder.1} parent=1 // pred_fallthru
      _
    // Predicated region
    $region50: #{stocked_res_autoencoder.1} parent=1 // pred_check
      _
    $region51: #{stocked_res_autoencoder.1} parent=1 // pred_check_branch
      %44 = sbr.rel (0) target = $region53
    $region52: #{stocked_res_autoencoder.1} parent=1 // pred_region
      _
    $region53: #{stocked_res_autoencoder.1} parent=1 // pred_fallthru
      _
    %v46 = vld [vmem:[%s0] sm:$0xff]
    %v47 = vld [vmem:[%s0 + $0x8] sm:$0xff]
    %v48 = vld [vmem:[%s0 + $0x10] sm:$0xff]
    %v49 = vld [vmem:[%s0 + $0x18] sm:$0xff]
    %v50 = vld [vmem:[%s0 + $0x20] sm:$0xff]
    %v51 = vld [vmem:[%s0 + $0x28] sm:$0xff]
    %v52 = vld [vmem:[%s0 + $0x30] sm:$0xff]
    %v53 = vld [vmem:[%s0 + $0x38] sm:$0xff]
    %v54 = vld [vmem:[%s0 + $0x40] sm:$0xff]
    %v55 = vld [vmem:[%s0 + $0x48] sm:$0xff]
    %v56 = vld [vmem:[%s0 + $0x50] sm:$0xff]
    %v57 = vld [vmem:[%s0 + $0x58] sm:$0xff]
    %v58 = vld [vmem:[%s0 + $0x60] sm:$0xff]
    %v59 = vld [vmem:[%s0 + $0x68] sm:$0xff]
    %v60 = vld [vmem:[%s0 + $0x70] sm:$0xff]
    %v61 = vld [vmem:[%s0 + $0x78] sm:$0xff]
    %v62 = vpack.c.bf16 %v47, %v46
    %v63 = vpack.c.bf16 %v49, %v48
    %v64 = vpack.c.bf16 %v51, %v50
    %v65 = vpack.c.bf16 %v53, %v52
    %v66 = vpack.c.bf16 %v55, %v54
    %v67 = vpack.c.bf16 %v57, %v56
    %v68 = vpack.c.bf16 %v59, %v58
    %v69 = vpack.c.bf16 %v61, %v60
    %v70 = vld [vmem:[%s1] sm:$0xf]
    %v71 = vld [vmem:[%s1 + $0x4] sm:$0xf]
    %v72 = vld [vmem:[%s1 + $0x8] sm:$0xf]
    %v73 = vld [vmem:[%s1 + $0xc] sm:$0xf]
    %v74 = vld [vmem:[%s2] sm:$0xff]
    %v75 = vld [vmem:[%s2 + $0x8] sm:$0xff]
    %v76 = vld [vmem:[%s2 + $0x10] sm:$0xff]
    %v77 = vld [vmem:[%s2 + $0x18] sm:$0xff]
    %79 = vset.pattern.permute.xlu0 0
    %80 = vperm.xlu0 %79, %v74
    %v81 = vpop.permute.xlu0 %80
    %84 = vset.pattern.permute.xlu0 0
    %85 = vperm.xlu0 %84, %v75
    %v86 = vpop.permute.xlu0 %85
    %89 = vset.pattern.permute.xlu0 0
    %90 = vperm.xlu0 %89, %v76
    %v91 = vpop.permute.xlu0 %90
    %94 = vset.pattern.permute.xlu0 0
    %95 = vperm.xlu0 %94, %v77
    %v96 = vpop.permute.xlu0 %95
    %v102 = vunpack.c.l.b16 %v70
    %v103 = vunpack.c.l.b16 %v71
    %v104 = vunpack.c.l.b16 %v72
    %v105 = vunpack.c.l.b16 %v73
    %v106 = vpack.c.b16 %v103, %v102
    %v107 = vpack.c.b16 %v105, %v104
    %vm108 = vcmask 130048
    %v110 = vsel %vm108, %v106, 0
    %v113 = vsel %vm108, %v107, 0
    %v116 = vsel %vm108, %v62, 0
    %v119 = vsel %vm108, %v63, 0
    %v122 = vsel %vm108, %v64, 0
    %v125 = vsel %vm108, %v65, 0
    %v128 = vsel %vm108, %v66, 0
    %v131 = vsel %vm108, %v67, 0
    %v134 = vsel %vm108, %v68, 0
    %v137 = vsel %vm108, %v69, 0
    %139 = vmatprep.subr.bf16.mxu0 0
    %140 = vmatpush1.bf16.xpose.msra.mxu0 %v137
    %141 = vmatprep.subr.bf16.mxu0 0
    %142 = vmatpush1.bf16.xpose.msra.mxu0 %v134
    %143 = vmatprep.subr.bf16.mxu0 0
    %144 = vmatpush1.bf16.xpose.msra.mxu0 %v131
    %145 = vmatprep.subr.bf16.mxu0 0
    %146 = vmatpush1.bf16.xpose.msra.mxu0 %v128
    %147 = vmatprep.subr.bf16.mxu0 0
    %148 = vmatpush1.bf16.xpose.msra.mxu0 %v125
    %149 = vmatprep.subr.bf16.mxu0 0
    %150 = vmatpush1.bf16.xpose.msra.mxu0 %v122
    %151 = vmatprep.subr.bf16.mxu0 0
    %152 = vmatpush1.bf16.xpose.msra.mxu0 %v119
    %153 = vmatprep.subr.bf16.mxu0 0
    %154 = vmatpush1.bf16.xpose.msra.mxu0 %v116
    %155 = vmatprep.subr.bf16.mxu0 0
    %156 = vmatpush2.bf16.xpose.msra.mxu0 0
    %157 = vmatprep.subr.bf16.mxu0 0
    %158 = vmatpush2.bf16.xpose.msra.mxu0 0
    %159 = vmatprep.subr.bf16.mxu0 0
    %160 = vmatpush2.bf16.xpose.msra.mxu0 0
    %161 = vmatprep.subr.bf16.mxu0 0
    %162 = vmatpush2.bf16.xpose.msra.mxu0 0
    %163 = vmatprep.subr.bf16.mxu0 0
    %164 = vmatpush2.bf16.xpose.msra.mxu0 0
    %165 = vmatprep.subr.bf16.mxu0 0
    %166 = vmatpush2.bf16.xpose.msra.mxu0 0
    %167 = vmatprep.subr.bf16.mxu0 0
    %168 = vmatpush2.bf16.xpose.msra.mxu0 0
    %169 = vmatprep.subr.bf16.mxu0 0
    %170 = vmatpush2.bf16.xpose.msra.mxu0 0
    %171 = vmatprep.mubr.bf16.mxu0 0
    %172 = vmatmul.mubr.bf16.gmra.mxu0 %v110
    %v173 = vpop.f32.mrf.mxu0
    %v174 = vadd.f32 %v81, %v173
    %v175 = vpop.f32.mrf.mxu0
    %v176 = vpop.f32.mrf.mxu0
    %v177 = vadd.f32 %v86, %v176
    %v178 = vpop.f32.mrf.mxu0
    %179 = vmatprep.mubr.bf16.mxu0 0
    %180 = vmatmul.mubr.bf16.gmra.mxu0 %v113
    %v181 = vpop.f32.mrf.mxu0
    %v182 = vadd.f32 %v91, %v181
    %v183 = vpop.f32.mrf.mxu0
    %v184 = vpop.f32.mrf.mxu0
    %v185 = vadd.f32 %v96, %v184
    %v186 = vpop.f32.mrf.mxu0
    %187 = vdwg.mxu0
    %v188 = vpack.c.bf16 %v177, %v174
    %v189 = vpack.c.bf16 %v185, %v182
    %v190 = vtanh.bf16.pop %v188
    %v191 = vtanh.bf16.pop %v189
    %v192 = vld [vmem:[%s3] sm:$0xf]
    %v193 = vld [vmem:[%s3 + $0x4] sm:$0xf]
    %v194 = vld [vmem:[%s3 + $0x8] sm:$0xf]
    %v195 = vld [vmem:[%s3 + $0xc] sm:$0xf]
    %v196 = vld [vmem:[%s3 + $0x10] sm:$0xf]
    %v197 = vld [vmem:[%s3 + $0x14] sm:$0xf]
    %v198 = vld [vmem:[%s4] sm:$0xff]
    %v199 = vld [vmem:[%s4 + $0x8] sm:$0xff]
    %v200 = vld [vmem:[%s4 + $0x10] sm:$0xff]
    %v201 = vld [vmem:[%s4 + $0x18] sm:$0xff]
    %v202 = vld [vmem:[%s4 + $0x20] sm:$0xff]
    %v203 = vld [vmem:[%s4 + $0x28] sm:$0xff]
    %205 = vset.pattern.permute.xlu0 0
    %206 = vperm.xlu0 %205, %v198
    %v207 = vpop.permute.xlu0 %206
    %210 = vset.pattern.permute.xlu0 0
    %211 = vperm.xlu0 %210, %v199
    %v212 = vpop.permute.xlu0 %211
    %215 = vset.pattern.permute.xlu0 0
    %216 = vperm.xlu0 %215, %v200
    %v217 = vpop.permute.xlu0 %216
    %220 = vset.pattern.permute.xlu0 0
    %221 = vperm.xlu0 %220, %v201
    %v222 = vpop.permute.xlu0 %221
    %225 = vset.pattern.permute.xlu0 0
    %226 = vperm.xlu0 %225, %v202
    %v227 = vpop.permute.xlu0 %226
    %230 = vset.pattern.permute.xlu0 0
    %231 = vperm.xlu0 %230, %v203
    %v232 = vpop.permute.xlu0 %231
    %v240 = vunpack.c.l.b16 %v192
    %v241 = vunpack.c.l.b16 %v193
    %v242 = vunpack.c.l.b16 %v194
    %v243 = vunpack.c.l.b16 %v195
    %v244 = vunpack.c.l.b16 %v196
    %v245 = vunpack.c.l.b16 %v197
    %v246 = vpack.c.b16 %v241, %v240
    %v247 = vpack.c.b16 %v243, %v242
    %v248 = vpack.c.b16 %v245, %v244
    %vm249 = vcmask 261120
    %v251 = vsel %vm249, %v246, 0
    %v254 = vsel %vm249, %v247, 0
    %v257 = vsel %vm249, %v248, 0
    %259 = vmatprep.subr.bf16.mxu0 0
    %260 = vmatpush1.bf16.msra.mxu0 0
    %261 = vmatprep.subr.bf16.mxu0 0
    %262 = vmatpush1.bf16.msra.mxu0 0
    %263 = vmatprep.subr.bf16.mxu0 0
    %264 = vmatpush1.bf16.msra.mxu0 0
    %265 = vmatprep.subr.bf16.mxu0 0
    %266 = vmatpush1.bf16.msra.mxu0 0
    %267 = vmatprep.subr.bf16.mxu0 0
    %268 = vmatpush1.bf16.msra.mxu0 0
    %269 = vmatprep.subr.bf16.mxu0 0
    %270 = vmatpush1.bf16.msra.mxu0 0
    %271 = vmatprep.subr.bf16.mxu0 0
    %272 = vmatpush1.bf16.msra.mxu0 %v191
    %273 = vmatprep.subr.bf16.mxu0 0
    %274 = vmatpush1.bf16.msra.mxu0 %v190
    %275 = vmatprep.subr.bf16.mxu0 0
    %276 = vmatpush2.bf16.msra.mxu0 0
    %277 = vmatprep.subr.bf16.mxu0 0
    %278 = vmatpush2.bf16.msra.mxu0 0
    %279 = vmatprep.subr.bf16.mxu0 0
    %280 = vmatpush2.bf16.msra.mxu0 0
    %281 = vmatprep.subr.bf16.mxu0 0
    %282 = vmatpush2.bf16.msra.mxu0 0
    %283 = vmatprep.subr.bf16.mxu0 0
    %284 = vmatpush2.bf16.msra.mxu0 0
    %285 = vmatprep.subr.bf16.mxu0 0
    %286 = vmatpush2.bf16.msra.mxu0 0
    %287 = vmatprep.subr.bf16.mxu0 0
    %288 = vmatpush2.bf16.msra.mxu0 0
    %289 = vmatprep.subr.bf16.mxu0 0
    %290 = vmatpush2.bf16.msra.mxu0 0
    %291 = vmatprep.mubr.bf16.mxu0 0
    %292 = vmatmul.mubr.bf16.gmra.mxu0 %v251
    %v293 = vpop.f32.mrf.mxu0
    %v294 = vadd.f32 %v207, %v293
    %v295 = vpop.f32.mrf.mxu0
    %v296 = vpop.f32.mrf.mxu0
    %v297 = vadd.f32 %v212, %v296
    %v298 = vpop.f32.mrf.mxu0
    %299 = vmatprep.mubr.bf16.mxu0 0
    %300 = vmatmul.mubr.bf16.gmra.mxu0 %v254
    %v301 = vpop.f32.mrf.mxu0
    %v302 = vadd.f32 %v217, %v301
    %v303 = vpop.f32.mrf.mxu0
    %v304 = vpop.f32.mrf.mxu0
    %v305 = vadd.f32 %v222, %v304
    %v306 = vpop.f32.mrf.mxu0
    %307 = vmatprep.mubr.bf16.mxu0 0
    %308 = vmatmul.mubr.bf16.gmra.mxu0 %v257
    %v309 = vpop.f32.mrf.mxu0
    %v310 = vadd.f32 %v227, %v309
    %v311 = vpop.f32.mrf.mxu0
    %v312 = vpop.f32.mrf.mxu0
    %v313 = vadd.f32 %v232, %v312
    %v314 = vpop.f32.mrf.mxu0
    %315 = vdwg.mxu0
    %v316 = vpack.c.bf16 %v297, %v294
    %v317 = vpack.c.bf16 %v305, %v302
    %v318 = vpack.c.bf16 %v313, %v310
    %v319 = vtanh.bf16.pop %v316
    %v320 = vtanh.bf16.pop %v317
    %v321 = vtanh.bf16.pop %v318
    %v322 = vld [vmem:[%s5] sm:$0xf]
    %v323 = vld [vmem:[%s5 + $0x4] sm:$0xf]
    %v324 = vld [vmem:[%s5 + $0x8] sm:$0xf]
    %v325 = vld [vmem:[%s5 + $0xc] sm:$0xf]
    %v326 = vld [vmem:[%s5 + $0x10] sm:$0xf]
    %v327 = vld [vmem:[%s5 + $0x14] sm:$0xf]
    %v328 = vld [vmem:[%s5 + $0x18] sm:$0xf]
    %v329 = vld [vmem:[%s5 + $0x1c] sm:$0xf]
    %v330 = vld [vmem:[%s6] sm:$0xff]
    %v331 = vld [vmem:[%s6 + $0x8] sm:$0xff]
    %v332 = vld [vmem:[%s6 + $0x10] sm:$0xff]
    %v333 = vld [vmem:[%s6 + $0x18] sm:$0xff]
    %v334 = vld [vmem:[%s6 + $0x20] sm:$0xff]
    %v335 = vld [vmem:[%s6 + $0x28] sm:$0xff]
    %v336 = vld [vmem:[%s6 + $0x30] sm:$0xff]
    %v337 = vld [vmem:[%s6 + $0x38] sm:$0xff]
    %339 = vset.pattern.permute.xlu0 0
    %340 = vperm.xlu0 %339, %v330
    %v341 = vpop.permute.xlu0 %340
    %344 = vset.pattern.permute.xlu0 0
    %345 = vperm.xlu0 %344, %v331
    %v346 = vpop.permute.xlu0 %345
    %349 = vset.pattern.permute.xlu0 0
    %350 = vperm.xlu0 %349, %v332
    %v351 = vpop.permute.xlu0 %350
    %354 = vset.pattern.permute.xlu0 0
    %355 = vperm.xlu0 %354, %v333
    %v356 = vpop.permute.xlu0 %355
    %359 = vset.pattern.permute.xlu0 0
    %360 = vperm.xlu0 %359, %v334
    %v361 = vpop.permute.xlu0 %360
    %364 = vset.pattern.permute.xlu0 0
    %365 = vperm.xlu0 %364, %v335
    %v366 = vpop.permute.xlu0 %365
    %369 = vset.pattern.permute.xlu0 0
    %370 = vperm.xlu0 %369, %v336
    %v371 = vpop.permute.xlu0 %370
    %374 = vset.pattern.permute.xlu0 0
    %375 = vperm.xlu0 %374, %v337
    %v376 = vpop.permute.xlu0 %375
    %v386 = vunpack.c.l.b16 %v322
    %v387 = vunpack.c.l.b16 %v323
    %v388 = vunpack.c.l.b16 %v324
    %v389 = vunpack.c.l.b16 %v325
    %v390 = vunpack.c.l.b16 %v326
    %v391 = vunpack.c.l.b16 %v327
    %v392 = vunpack.c.l.b16 %v328
    %v393 = vunpack.c.l.b16 %v329
    %v394 = vpack.c.b16 %v387, %v386
    %v395 = vpack.c.b16 %v389, %v388
    %v396 = vpack.c.b16 %v391, %v390
    %v397 = vpack.c.b16 %v393, %v392
    %vm398 = vcmask 392192
    %v400 = vsel %vm398, %v394, 0
    %v403 = vsel %vm398, %v395, 0
    %v406 = vsel %vm398, %v396, 0
    %v409 = vsel %vm398, %v397, 0
    %411 = vmatprep.subr.bf16.mxu0 0
    %412 = vmatpush1.bf16.msra.mxu0 0
    %413 = vmatprep.subr.bf16.mxu0 0
    %414 = vmatpush1.bf16.msra.mxu0 0
    %415 = vmatprep.subr.bf16.mxu0 0
    %416 = vmatpush1.bf16.msra.mxu0 0
    %417 = vmatprep.subr.bf16.mxu0 0
    %418 = vmatpush1.bf16.msra.mxu0 0
    %419 = vmatprep.subr.bf16.mxu0 0
    %420 = vmatpush1.bf16.msra.mxu0 0
    %421 = vmatprep.subr.bf16.mxu0 0
    %422 = vmatpush1.bf16.msra.mxu0 %v321
    %423 = vmatprep.subr.bf16.mxu0 0
    %424 = vmatpush1.bf16.msra.mxu0 %v320
    %425 = vmatprep.subr.bf16.mxu0 0
    %426 = vmatpush1.bf16.msra.mxu0 %v319
    %427 = vmatprep.subr.bf16.mxu0 0
    %428 = vmatpush2.bf16.msra.mxu0 0
    %429 = vmatprep.subr.bf16.mxu0 0
    %430 = vmatpush2.bf16.msra.mxu0 0
    %431 = vmatprep.subr.bf16.mxu0 0
    %432 = vmatpush2.bf16.msra.mxu0 0
    %433 = vmatprep.subr.bf16.mxu0 0
    %434 = vmatpush2.bf16.msra.mxu0 0
    %435 = vmatprep.subr.bf16.mxu0 0
    %436 = vmatpush2.bf16.msra.mxu0 0
    %437 = vmatprep.subr.bf16.mxu0 0
    %438 = vmatpush2.bf16.msra.mxu0 0
    %439 = vmatprep.subr.bf16.mxu0 0
    %440 = vmatpush2.bf16.msra.mxu0 0
    %441 = vmatprep.subr.bf16.mxu0 0
    %442 = vmatpush2.bf16.msra.mxu0 0
    %443 = vmatprep.mubr.bf16.mxu0 0
    %444 = vmatmul.mubr.bf16.gmra.mxu0 %v400
    %v445 = vpop.f32.mrf.mxu0
    %v446 = vadd.f32 %v341, %v445
    %v447 = vpop.f32.mrf.mxu0
    %v448 = vpop.f32.mrf.mxu0
    %v449 = vadd.f32 %v346, %v448
    %v450 = vpop.f32.mrf.mxu0
    %451 = vmatprep.mubr.bf16.mxu0 0
    %452 = vmatmul.mubr.bf16.gmra.mxu0 %v403
    %v453 = vpop.f32.mrf.mxu0
    %v454 = vadd.f32 %v351, %v453
    %v455 = vpop.f32.mrf.mxu0
    %v456 = vpop.f32.mrf.mxu0
    %v457 = vadd.f32 %v356, %v456
    %v458 = vpop.f32.mrf.mxu0
    %459 = vmatprep.mubr.bf16.mxu0 0
    %460 = vmatmul.mubr.bf16.gmra.mxu0 %v406
    %v461 = vpop.f32.mrf.mxu0
    %v462 = vadd.f32 %v361, %v461
    %v463 = vpop.f32.mrf.mxu0
    %v464 = vpop.f32.mrf.mxu0
    %v465 = vadd.f32 %v366, %v464
    %v466 = vpop.f32.mrf.mxu0
    %467 = vmatprep.mubr.bf16.mxu0 0
    %468 = vmatmul.mubr.bf16.gmra.mxu0 %v409
    %v469 = vpop.f32.mrf.mxu0
    %v470 = vadd.f32 %v371, %v469
    %v471 = vpop.f32.mrf.mxu0
    %v472 = vpop.f32.mrf.mxu0
    %v473 = vadd.f32 %v376, %v472
    %v474 = vpop.f32.mrf.mxu0
    %475 = vdwg.mxu0
    %v476 = vpack.c.bf16 %v449, %v446
    %v477 = vpack.c.bf16 %v457, %v454
    %v478 = vpack.c.bf16 %v465, %v462
    %v479 = vpack.c.bf16 %v473, %v470
    %v480 = vld [vmem:[%s7] sm:$0xf]
    %v481 = vld [vmem:[%s7 + $0x4] sm:$0xf]
    %v482 = vld [vmem:[%s7 + $0x8] sm:$0xf]
    %v483 = vld [vmem:[%s7 + $0xc] sm:$0xf]
    %v484 = vld [vmem:[%s7 + $0x10] sm:$0xf]
    %v485 = vld [vmem:[%s7 + $0x14] sm:$0xf]
    %v486 = vld [vmem:[%s8] sm:$0xff]
    %v487 = vld [vmem:[%s8 + $0x8] sm:$0xff]
    %v488 = vld [vmem:[%s8 + $0x10] sm:$0xff]
    %v489 = vld [vmem:[%s8 + $0x18] sm:$0xff]
    %v490 = vld [vmem:[%s8 + $0x20] sm:$0xff]
    %v491 = vld [vmem:[%s8 + $0x28] sm:$0xff]
    %493 = vset.pattern.permute.xlu0 0
    %494 = vperm.xlu0 %493, %v486
    %v495 = vpop.permute.xlu0 %494
    %498 = vset.pattern.permute.xlu0 0
    %499 = vperm.xlu0 %498, %v487
    %v500 = vpop.permute.xlu0 %499
    %503 = vset.pattern.permute.xlu0 0
    %504 = vperm.xlu0 %503, %v488
    %v505 = vpop.permute.xlu0 %504
    %508 = vset.pattern.permute.xlu0 0
    %509 = vperm.xlu0 %508, %v489
    %v510 = vpop.permute.xlu0 %509
    %513 = vset.pattern.permute.xlu0 0
    %514 = vperm.xlu0 %513, %v490
    %v515 = vpop.permute.xlu0 %514
    %518 = vset.pattern.permute.xlu0 0
    %519 = vperm.xlu0 %518, %v491
    %v520 = vpop.permute.xlu0 %519
    %v528 = vunpack.c.l.b16 %v480
    %v529 = vunpack.c.l.b16 %v481
    %v530 = vunpack.c.l.b16 %v482
    %v531 = vunpack.c.l.b16 %v483
    %v532 = vunpack.c.l.b16 %v484
    %v533 = vunpack.c.l.b16 %v485
    %v534 = vpack.c.b16 %v529, %v528
    %v535 = vpack.c.b16 %v531, %v530
    %v536 = vpack.c.b16 %v533, %v532
    %vm537 = vcmask 523264
    %v539 = vsel %vm537, %v534, 0
    %v542 = vsel %vm537, %v535, 0
    %v545 = vsel %vm537, %v536, 0
    %547 = vmatprep.subr.bf16.mxu0 0
    %548 = vmatpush1.bf16.msra.mxu0 0
    %549 = vmatprep.subr.bf16.mxu0 0
    %550 = vmatpush1.bf16.msra.mxu0 0
    %551 = vmatprep.subr.bf16.mxu0 0
    %552 = vmatpush1.bf16.msra.mxu0 0
    %553 = vmatprep.subr.bf16.mxu0 0
    %554 = vmatpush1.bf16.msra.mxu0 0
    %555 = vmatprep.subr.bf16.mxu0 0
    %556 = vmatpush1.bf16.msra.mxu0 %v479
    %557 = vmatprep.subr.bf16.mxu0 0
    %558 = vmatpush1.bf16.msra.mxu0 %v478
    %559 = vmatprep.subr.bf16.mxu0 0
    %560 = vmatpush1.bf16.msra.mxu0 %v477
    %561 = vmatprep.subr.bf16.mxu0 0
    %562 = vmatpush1.bf16.msra.mxu0 %v476
    %563 = vmatprep.subr.bf16.mxu0 0
    %564 = vmatpush2.bf16.msra.mxu0 0
    %565 = vmatprep.subr.bf16.mxu0 0
    %566 = vmatpush2.bf16.msra.mxu0 0
    %567 = vmatprep.subr.bf16.mxu0 0
    %568 = vmatpush2.bf16.msra.mxu0 0
    %569 = vmatprep.subr.bf16.mxu0 0
    %570 = vmatpush2.bf16.msra.mxu0 0
    %571 = vmatprep.subr.bf16.mxu0 0
    %572 = vmatpush2.bf16.msra.mxu0 0
    %573 = vmatprep.subr.bf16.mxu0 0
    %574 = vmatpush2.bf16.msra.mxu0 0
    %575 = vmatprep.subr.bf16.mxu0 0
    %576 = vmatpush2.bf16.msra.mxu0 0
    %577 = vmatprep.subr.bf16.mxu0 0
    %578 = vmatpush2.bf16.msra.mxu0 0
    %579 = vmatprep.mubr.bf16.mxu0 0
    %580 = vmatmul.mubr.bf16.gmra.mxu0 %v539
    %v581 = vpop.f32.mrf.mxu0
    %v582 = vadd.f32 %v495, %v581
    %v583 = vpop.f32.mrf.mxu0
    %v584 = vpop.f32.mrf.mxu0
    %v585 = vadd.f32 %v500, %v584
    %v586 = vpop.f32.mrf.mxu0
    %587 = vmatprep.mubr.bf16.mxu0 0
    %588 = vmatmul.mubr.bf16.gmra.mxu0 %v542
    %v589 = vpop.f32.mrf.mxu0
    %v590 = vadd.f32 %v505, %v589
    %v591 = vpop.f32.mrf.mxu0
    %v592 = vpop.f32.mrf.mxu0
    %v593 = vadd.f32 %v510, %v592
    %v594 = vpop.f32.mrf.mxu0
    %595 = vmatprep.mubr.bf16.mxu0 0
    %596 = vmatmul.mubr.bf16.gmra.mxu0 %v545
    %v597 = vpop.f32.mrf.mxu0
    %v598 = vadd.f32 %v515, %v597
    %v599 = vpop.f32.mrf.mxu0
    %v600 = vpop.f32.mrf.mxu0
    %v601 = vadd.f32 %v520, %v600
    %v602 = vpop.f32.mrf.mxu0
    %603 = vdwg.mxu0
    %v604 = vpack.c.bf16 %v585, %v582
    %v605 = vpack.c.bf16 %v593, %v590
    %v606 = vpack.c.bf16 %v601, %v598
    %v607 = vtanh.bf16.pop %v604
    %v608 = vtanh.bf16.pop %v605
    %v609 = vtanh.bf16.pop %v606
    %v610 = vld [vmem:[%s9] sm:$0xf]
    %v611 = vld [vmem:[%s9 + $0x4] sm:$0xf]
    %v612 = vld [vmem:[%s9 + $0x8] sm:$0xf]
    %v613 = vld [vmem:[%s9 + $0xc] sm:$0xf]
    %v614 = vld [vmem:[%s10] sm:$0xff]
    %v615 = vld [vmem:[%s10 + $0x8] sm:$0xff]
    %v616 = vld [vmem:[%s10 + $0x10] sm:$0xff]
    %v617 = vld [vmem:[%s10 + $0x18] sm:$0xff]
    %619 = vset.pattern.permute.xlu0 0
    %620 = vperm.xlu0 %619, %v614
    %v621 = vpop.permute.xlu0 %620
    %624 = vset.pattern.permute.xlu0 0
    %625 = vperm.xlu0 %624, %v615
    %v626 = vpop.permute.xlu0 %625
    %629 = vset.pattern.permute.xlu0 0
    %630 = vperm.xlu0 %629, %v616
    %v631 = vpop.permute.xlu0 %630
    %634 = vset.pattern.permute.xlu0 0
    %635 = vperm.xlu0 %634, %v617
    %v636 = vpop.permute.xlu0 %635
    %v642 = vunpack.c.l.b16 %v610
    %v643 = vunpack.c.l.b16 %v611
    %v644 = vunpack.c.l.b16 %v612
    %v645 = vunpack.c.l.b16 %v613
    %v646 = vpack.c.b16 %v643, %v642
    %v647 = vpack.c.b16 %v645, %v644
    %v649 = vsel %vm398, %v646, 0
    %v652 = vsel %vm398, %v647, 0
    %654 = vmatprep.subr.bf16.mxu0 0
    %655 = vmatpush1.bf16.msra.mxu0 0
    %656 = vmatprep.subr.bf16.mxu0 0
    %657 = vmatpush1.bf16.msra.mxu0 0
    %658 = vmatprep.subr.bf16.mxu0 0
    %659 = vmatpush1.bf16.msra.mxu0 0
    %660 = vmatprep.subr.bf16.mxu0 0
    %661 = vmatpush1.bf16.msra.mxu0 0
    %662 = vmatprep.subr.bf16.mxu0 0
    %663 = vmatpush1.bf16.msra.mxu0 0
    %664 = vmatprep.subr.bf16.mxu0 0
    %665 = vmatpush1.bf16.msra.mxu0 %v609
    %666 = vmatprep.subr.bf16.mxu0 0
    %667 = vmatpush1.bf16.msra.mxu0 %v608
    %668 = vmatprep.subr.bf16.mxu0 0
    %669 = vmatpush1.bf16.msra.mxu0 %v607
    %670 = vmatprep.subr.bf16.mxu0 0
    %671 = vmatpush2.bf16.msra.mxu0 0
    %672 = vmatprep.subr.bf16.mxu0 0
    %673 = vmatpush2.bf16.msra.mxu0 0
    %674 = vmatprep.subr.bf16.mxu0 0
    %675 = vmatpush2.bf16.msra.mxu0 0
    %676 = vmatprep.subr.bf16.mxu0 0
    %677 = vmatpush2.bf16.msra.mxu0 0
    %678 = vmatprep.subr.bf16.mxu0 0
    %679 = vmatpush2.bf16.msra.mxu0 0
    %680 = vmatprep.subr.bf16.mxu0 0
    %681 = vmatpush2.bf16.msra.mxu0 0
    %682 = vmatprep.subr.bf16.mxu0 0
    %683 = vmatpush2.bf16.msra.mxu0 0
    %684 = vmatprep.subr.bf16.mxu0 0
    %685 = vmatpush2.bf16.msra.mxu0 0
    %686 = vmatprep.mubr.bf16.mxu0 0
    %687 = vmatmul.mubr.bf16.gmra.mxu0 %v649
    %v688 = vpop.f32.mrf.mxu0
    %v689 = vadd.f32 %v621, %v688
    %v690 = vpop.f32.mrf.mxu0
    %v691 = vpop.f32.mrf.mxu0
    %v692 = vadd.f32 %v626, %v691
    %v693 = vpop.f32.mrf.mxu0
    %694 = vmatprep.mubr.bf16.mxu0 0
    %695 = vmatmul.mubr.bf16.gmra.mxu0 %v652
    %v696 = vpop.f32.mrf.mxu0
    %v697 = vadd.f32 %v631, %v696
    %v698 = vpop.f32.mrf.mxu0
    %v699 = vpop.f32.mrf.mxu0
    %v700 = vadd.f32 %v636, %v699
    %v701 = vpop.f32.mrf.mxu0
    %702 = vdwg.mxu0
    %v703 = vpack.c.bf16 %v692, %v689
    %v704 = vpack.c.bf16 %v700, %v697
    %v705 = vtanh.bf16.pop %v703
    %v706 = vtanh.bf16.pop %v704
    %v707 = vld [vmem:[%s11] sm:$0xf]
    %v708 = vld [vmem:[%s11 + $0x4] sm:$0xf]
    %v709 = vld [vmem:[%s12] sm:$0xff]
    %v710 = vld [vmem:[%s12 + $0x8] sm:$0xff]
    %712 = vset.pattern.permute.xlu0 0
    %713 = vperm.xlu0 %712, %v709
    %v714 = vpop.permute.xlu0 %713
    %717 = vset.pattern.permute.xlu0 0
    %718 = vperm.xlu0 %717, %v710
    %v719 = vpop.permute.xlu0 %718
    %v723 = vunpack.c.l.b16 %v707
    %v724 = vunpack.c.l.b16 %v708
    %v725 = vpack.c.b16 %v724, %v723
    %v727 = vsel %vm249, %v725, 0
    %729 = vmatprep.subr.bf16.mxu0 0
    %730 = vmatpush1.bf16.msra.mxu0 0
    %731 = vmatprep.subr.bf16.mxu0 0
    %732 = vmatpush1.bf16.msra.mxu0 0
    %733 = vmatprep.subr.bf16.mxu0 0
    %734 = vmatpush1.bf16.msra.mxu0 0
    %735 = vmatprep.subr.bf16.mxu0 0
    %736 = vmatpush1.bf16.msra.mxu0 0
    %737 = vmatprep.subr.bf16.mxu0 0
    %738 = vmatpush1.bf16.msra.mxu0 0
    %739 = vmatprep.subr.bf16.mxu0 0
    %740 = vmatpush1.bf16.msra.mxu0 0
    %741 = vmatprep.subr.bf16.mxu0 0
    %742 = vmatpush1.bf16.msra.mxu0 %v706
    %743 = vmatprep.subr.bf16.mxu0 0
    %744 = vmatpush1.bf16.msra.mxu0 %v705
    %745 = vmatprep.subr.bf16.mxu0 0
    %746 = vmatpush2.bf16.msra.mxu0 0
    %747 = vmatprep.subr.bf16.mxu0 0
    %748 = vmatpush2.bf16.msra.mxu0 0
    %749 = vmatprep.subr.bf16.mxu0 0
    %750 = vmatpush2.bf16.msra.mxu0 0
    %751 = vmatprep.subr.bf16.mxu0 0
    %752 = vmatpush2.bf16.msra.mxu0 0
    %753 = vmatprep.subr.bf16.mxu0 0
    %754 = vmatpush2.bf16.msra.mxu0 0
    %755 = vmatprep.subr.bf16.mxu0 0
    %756 = vmatpush2.bf16.msra.mxu0 0
    %757 = vmatprep.subr.bf16.mxu0 0
    %758 = vmatpush2.bf16.msra.mxu0 0
    %759 = vmatprep.subr.bf16.mxu0 0
    %760 = vmatpush2.bf16.msra.mxu0 0
    %761 = vmatprep.mubr.bf16.mxu0 0
    %762 = vmatmul.mubr.bf16.gmra.mxu0 %v727
    %v763 = vpop.f32.mrf.mxu0
    %v764 = vadd.f32 %v714, %v763
    %v765 = vpop.f32.mrf.mxu0
    %v766 = vpop.f32.mrf.mxu0
    %v767 = vadd.f32 %v719, %v766
    %v768 = vpop.f32.mrf.mxu0
    %769 = vdwg.mxu0
    %770 = vxpose.xlu0.b32.start [1/16] %v46, 128
    %771 = vxpose.xlu0.b32.cont [2/16] %v47, 128
    %772 = vxpose.xlu0.b32.cont [3/16] %v48, 128
    %773 = vxpose.xlu0.b32.cont [4/16] %v49, 128
    %774 = vxpose.xlu0.b32.cont [5/16] %v50, 128
    %775 = vxpose.xlu0.b32.cont [6/16] %v51, 128
    %776 = vxpose.xlu0.b32.cont [7/16] %v52, 128
    %777 = vxpose.xlu0.b32.cont [8/16] %v53, 128
    %778 = vxpose.xlu0.b32.cont [9/16] %v54, 128
    %779 = vxpose.xlu0.b32.cont [10/16] %v55, 128
    %780 = vxpose.xlu0.b32.cont [11/16] %v56, 128
    %781 = vxpose.xlu0.b32.cont [12/16] %v57, 128
    %782 = vxpose.xlu0.b32.cont [13/16] %v58, 128
    %783 = vxpose.xlu0.b32.cont [14/16] %v59, 128
    %784 = vxpose.xlu0.b32.cont [15/16] %v60, 128
    %785 = vxpose.xlu0.b32.end [16/16] %v61, 128
    %v786 = vpop.trf.xlu0
    %v787 = vpop.trf.xlu0
    %v788 = vpop.trf.xlu0
    %v789 = vpop.trf.xlu0
    %v790 = vpop.trf.xlu0
    %v791 = vpop.trf.xlu0
    %v792 = vpop.trf.xlu0
    %v793 = vpop.trf.xlu0
    %v794 = vpop.trf.xlu0
    %v795 = vpop.trf.xlu0
    %v796 = vpop.trf.xlu0
    %v797 = vpop.trf.xlu0
    %v798 = vpop.trf.xlu0
    %v799 = vpop.trf.xlu0
    %v800 = vpop.trf.xlu0
    %v801 = vpop.trf.xlu0
    %v802 = vadd.f32 %v764, %v786
    %v803 = vadd.f32 %v767, %v787
    %804 = vst [vmem:[#allocation2] sm:$0xff] %v802
    %805 = vst [vmem:[#allocation2 + $0x8] sm:$0xff] %v803
    // Predicated region
    $region54: #{stocked_res_autoencoder.1} parent=1 // pred_check
      _
    $region55: #{stocked_res_autoencoder.1} parent=1 // pred_check_branch
      %807 = sbr.rel (0) target = $region57
    $region56: #{stocked_res_autoencoder.1} parent=1 // pred_region
      %s809 = ssub.s32 256, 256
      %810 = vsyncadd [#allocation3], %s809
      %s811 = sshll.u32 [#allocation2], 4
      %s812 = int_to_ptr.vmem [resolvable:$true] %s811
      %817 = dma.vmem_to_hbm [thread:$0]  %s812, 256, %s13, [#allocation3], 128, 128, 8
    $region57: #{stocked_res_autoencoder.1} parent=1 // pred_fallthru
      _
    // Predicated region
    $region58: #{stocked_res_autoencoder.1} parent=1 // pred_check
      _
    $region59: #{stocked_res_autoencoder.1} parent=1 // pred_check_branch
      %819 = sbr.rel (0) target = $region61
    $region60: #{stocked_res_autoencoder.1} parent=1 // pred_region
      %820 = dma.done [#allocation3], 256
    $region61: #{stocked_res_autoencoder.1} parent=1 // pred_fallthru
      _
    %821 = vsyncpa [#allocation3], 1

</llo_original>
